<compile_context>
chip_gen: v7x
topology: tpu7x:2x2x1
jax: 0.10.0
libtpu: 0.0.40
codegen_flags: <defaults>
</compile_context>

<pallas_src>
import functools

import jax
import jax.numpy as jnp
from jax.experimental import pallas as pl
from jax.experimental.pallas import tpu as pltpu

_LANE = 128


def _tversky_kernel(pred_ref, gt_ref, out_ref, tp_vec, sp_vec, *,
                    rows_total, tile_rows, steps_per_core):
    core = pl.program_id(0)   # parallel axis (TensorCore split on v7x)
    step = pl.program_id(1)   # arbitrary reduction axis over row blocks

    @pl.when(step == 0)
    def _init():
        tp_vec[...] = jnp.zeros_like(tp_vec)
        sp_vec[...] = jnp.zeros_like(sp_vec)

    # (tile_rows, 256) interleaved probabilities: lane 2j -> class 0 of sample
    # j, lane 2j+1 -> class 1 of sample j (row-major view of the (N, 2) input).
    p = pred_ref[...].astype(jnp.float32)

    # Mask rows past the real data (partial last block / programs past the
    # data on the second core).  Uses the *un-clamped* logical block id.
    blk = core * steps_per_core + step
    row_id = (jax.lax.broadcasted_iota(jnp.int32, (tile_rows, 1), 0)
              + blk * tile_rows)
    p = jnp.where(row_id < rows_total, p, 0.0)

    # Signed one-hot expansion of gt via one exact bf16 MXU matmul:
    #   D[j, 2j] = -1, D[j, 2j+1] = +1
    #   (g @ D)[r, 2j] = -g_j,  (g @ D)[r, 2j+1] = +g_j
    jj = jax.lax.broadcasted_iota(jnp.int32, (_LANE, 2 * _LANE), 0)
    ll = jax.lax.broadcasted_iota(jnp.int32, (_LANE, 2 * _LANE), 1)
    dmat = jnp.where(ll == 2 * jj + 1, 1.0,
                     jnp.where(ll == 2 * jj, -1.0, 0.0)).astype(jnp.bfloat16)
    g = gt_ref[...].astype(jnp.bfloat16)            # labels in {0,1} -> exact
    gd = jnp.dot(g, dmat, preferred_element_type=jnp.float32)   # (T, 256)

    # Lane-vector accumulators; cross-lane reduce deferred to the finalize.
    tp_vec[...] += jnp.sum(p * gd, axis=0, keepdims=True)  # sum g_j*(c1_j-c0_j)
    sp_vec[...] += jnp.sum(p, axis=0, keepdims=True)        # per-lane sum(pred)

    @pl.when(step == pl.num_programs(1) - 1)
    def _finalize():
        lane = jax.lax.broadcasted_iota(jnp.int32, (1, 2 * _LANE), 1)
        even = jnp.where(lane % 2 == 0, 1.0, 0.0)
        sp = jnp.sum(sp_vec[...])                            # sum(pred)
        # sum_j c0_j (even lanes of sp_vec) + sum_j g_j*(c1_j - c0_j)
        #   = sum_i pred[i, gt[i]] = tp
        tp = jnp.sum(sp_vec[...] * even) + jnp.sum(tp_vec[...])
        sub = jax.lax.broadcasted_iota(jnp.int32, out_ref.shape, 1)
        out_ref[...] = jnp.where(sub == 0, tp, jnp.where(sub == 1, sp, 0.0))


def tversky_loss(nn_output, gt, *, alfa=0.3, smooth=1.0, focal_tl=False,
                 gamma=0.75, max_tile_rows=2048, num_cores=2):
    """Pallas implementation of TverskyLoss.forward.

    nn_output: (N, 2) float probabilities
    gt:        (N,)   int class labels in {0, 1}
    returns scalar float32 loss.
    """
    n, c = nn_output.shape
    if c != 2:
        raise ValueError("TverskyLoss expects exactly 2 classes")

    rows = pl.cdiv(n, _LANE)
    pad = rows * _LANE - n

    pred = nn_output
    gt_i = gt.astype(jnp.int32)
    if pad:
        # Only copies when N is not a multiple of 128; padded samples carry
        # pred == 0 and gt == 0 and therefore contribute 0 to every sum.
        pred = jnp.pad(pred, ((0, pad), (0, 0)))
        gt_i = jnp.pad(gt_i, (0, pad))

    # Zero-copy row-major reshapes: no transpose, no dtype cast, no onehot.
    pred_slab = pred.reshape(rows, 2 * _LANE)    # lanes [c0, c1, c0, c1, ...]
    gt_slab = gt_i.reshape(rows, _LANE)

    # Tile sizing: aim for >= ~4 pipelined steps per core, keep single DMAs
    # reasonably large (>= 256 rows ~ 256 KiB), cap at max_tile_rows (2048
    # rows -> ~6 MiB double-buffered, inside v7x's 32 MiB scoped VMEM), and
    # keep the sublane count a multiple of 16 (f32- and bf16-safe).
    tile_rows = pl.cdiv(rows, num_cores * 4)
    tile_rows = max(tile_rows, min(256, max_tile_rows))
    tile_rows = min(tile_rows, max_tile_rows)
    tile_rows = ((tile_rows + 15) // 16) * 16
    if tile_rows >= rows:
        tile_rows = rows                         # single full-extent block
    grid_rows = pl.cdiv(rows, tile_rows)
    steps_per_core = pl.cdiv(grid_rows, num_cores)
    max_blk = grid_rows - 1

    def row_block(core_idx, step_idx):
        # Programs past the real data re-fetch the last block (clamped) and
        # are fully masked in-kernel, so they contribute nothing.
        return jnp.minimum(core_idx * steps_per_core + step_idx, max_blk)

    kernel = functools.partial(
        _tversky_kernel, rows_total=rows, tile_rows=tile_rows,
        steps_per_core=steps_per_core)

    parts = pl.pallas_call(
        kernel,
        out_shape=jax.ShapeDtypeStruct((num_cores, 8, _LANE), jnp.float32),
        grid=(num_cores, steps_per_core),
        in_specs=[
            pl.BlockSpec((tile_rows, 2 * _LANE),
                         lambda c_, s_: (row_block(c_, s_), 0)),
            pl.BlockSpec((tile_rows, _LANE),
                         lambda c_, s_: (row_block(c_, s_), 0)),
        ],
        out_specs=pl.BlockSpec((1, 8, _LANE), lambda c_, s_: (c_, 0, 0)),
        scratch_shapes=[
            pltpu.VMEM((1, 2 * _LANE), jnp.float32),   # tp lane accumulator
            pltpu.VMEM((1, 2 * _LANE), jnp.float32),   # sum(pred) accumulator
        ],
        compiler_params=pltpu.CompilerParams(
            dimension_semantics=("parallel", "arbitrary")),
    )(pred_slab, gt_slab)

    # Trivial Tversky scalar math on the per-core partials (wrapper epilogue).
    tp = jnp.sum(parts[:, 0, 0])
    sp = jnp.sum(parts[:, 1, 0])
    n_valid = float(n)
    fn = n_valid - tp      # sum((1 - pred) * onehot)   (labels in {0, 1})
    fp = sp - tp           # sum((1 - onehot) * pred)
    ti = (tp + smooth) / (tp + alfa * fn + (1.0 - alfa) * fp + smooth)
    loss = 1.0 - ti
    if focal_tl:
        loss = loss ** gamma
    return loss


def _reference(nn_output, gt, alfa=0.3, smooth=1.0, focal_tl=False,
               gamma=0.75):
    # Pure-JAX reference mirroring the PyTorch forward.
    p = nn_output.astype(jnp.float32)
    onehot = jax.nn.one_hot(gt, 2, dtype=jnp.float32)
    tp = jnp.sum(onehot * p)
    fn = jnp.sum((1.0 - p) * onehot)
    fp = jnp.sum((1.0 - onehot) * p)
    ti = (tp + smooth) / (tp + alfa * fn + (1.0 - alfa) * fp + smooth)
    return jnp.power(1.0 - ti, gamma) if focal_tl else 1.0 - ti


if __name__ == "__main__":
    key = jax.random.PRNGKey(0)
    k1, k2, k3, k4 = jax.random.split(key, 4)

    # Case 1: tiny batch (N % 128 != 0 -> minimal pad, single full-extent
    # block, second core fully masked), default (non-focal) loss.
    n1 = 8
    probs1 = jax.nn.softmax(
        jax.random.normal(k1, (n1, 2), dtype=jnp.float32), axis=-1)
    gt1 = jax.random.randint(k2, (n1,), 0, 2, dtype=jnp.int32)
    loss1 = jax.block_until_ready(tversky_loss(probs1, gt1))
    ref1 = _reference(probs1, gt1)
    assert jnp.allclose(loss1, ref1, atol=1e-5, rtol=1e-5), (loss1, ref1)

    # Case 2: N multiple of 128 (zero-copy path), multi-step reduction with a
    # partial (masked) last block, both parallel-core slots used, focal branch.
    n2 = 4224   # 33 rows of 128 -> tile 16 rows, grid (2 cores, 2 steps)
    probs2 = jax.nn.softmax(
        jax.random.normal(k3, (n2, 2), dtype=jnp.float32), axis=-1)
    gt2 = jax.random.randint(k4, (n2,), 0, 2, dtype=jnp.int32)
    loss2 = jax.block_until_ready(
        tversky_loss(probs2, gt2, alfa=0.3, smooth=1.0, focal_tl=True,
                     gamma=0.75, max_tile_rows=16))
    ref2 = _reference(probs2, gt2, focal_tl=True)
    assert jnp.allclose(loss2, ref2, atol=1e-4, rtol=1e-4), (loss2, ref2)

    print("KERNEL_OK")
</pallas_src>

<mosaic_0001>
module attributes {stable_mosaic.version = 11 : i64} {
  func.func @_tversky_kernel(%arg0: i32, %arg1: i32, %arg2: memref<1x256xf32, #tpu.memory_space<vmem>>, %arg3: memref<1x128xi32, #tpu.memory_space<vmem>>, %arg4: memref<1x8x128xf32, #tpu.memory_space<vmem>>, %arg5: memref<1x256xf32, #tpu.memory_space<vmem>>, %arg6: memref<1x256xf32, #tpu.memory_space<vmem>>) attributes {dimension_semantics = [#tpu.dimension_semantics<parallel>, #tpu.dimension_semantics<arbitrary>], iteration_bounds = array<i64: 2, 1>, scalar_prefetch = 0 : i64, scratch_operands = 2 : i64, tpu.core_type = #tpu.core_type<tc>, window_params = [{transform_indices = @transform_0, window_bounds = array<i64: 1, 256>}, {transform_indices = @transform_1, window_bounds = array<i64: 1, 128>}, {transform_indices = @transform_2, window_bounds = array<i64: 1, 8, 128>}]} {
    %c0_i32 = arith.constant 0 : i32
    %0 = arith.cmpi eq, %arg1, %c0_i32 : i32
    %1 = arith.extui %0 : i1 to i32
    %c0_i32_0 = arith.constant 0 : i32
    %2 = arith.cmpi ne, %1, %c0_i32_0 : i32
    scf.if %2 {
      %cst_24 = arith.constant 0.000000e+00 : f32
      %49 = vector.broadcast %cst_24 : f32 to vector<1x256xf32>
      %c0_25 = arith.constant 0 : index
      %c0_26 = arith.constant 0 : index
      %50 = vector.load %arg5[%c0_25, %c0_26] : memref<1x256xf32, #tpu.memory_space<vmem>>, vector<1x256xf32>
      tpu.vector_store %arg5[%c0_25, %c0_26], %49 {strides = array<i32>} : memref<1x256xf32, #tpu.memory_space<vmem>>, vector<1x256xf32>,
      %cst_27 = arith.constant 0.000000e+00 : f32
      %51 = vector.broadcast %cst_27 : f32 to vector<1x256xf32>
      %c0_28 = arith.constant 0 : index
      %c0_29 = arith.constant 0 : index
      %52 = vector.load %arg6[%c0_28, %c0_29] : memref<1x256xf32, #tpu.memory_space<vmem>>, vector<1x256xf32>
      tpu.vector_store %arg6[%c0_28, %c0_29], %51 {strides = array<i32>} : memref<1x256xf32, #tpu.memory_space<vmem>>, vector<1x256xf32>,
    } else {
    }
    %c0 = arith.constant 0 : index
    %c0_1 = arith.constant 0 : index
    %3 = vector.load %arg2[%c0, %c0_1] : memref<1x256xf32, #tpu.memory_space<vmem>>, vector<1x256xf32>
    %c1_i32 = arith.constant 1 : i32
    %4 = arith.muli %arg0, %c1_i32 : i32
    %5 = arith.addi %4, %arg1 : i32
    %6 = tpu.iota {dimensions = array<i32: 0>} : vector<1x1xi32>
    %c1_i32_2 = arith.constant 1 : i32
    %7 = arith.muli %5, %c1_i32_2 : i32
    %8 = vector.broadcast %7 : i32 to vector<1x1xi32>
    %9 = arith.addi %6, %8 : vector<1x1xi32>
    %c1_i32_3 = arith.constant 1 : i32
    %10 = vector.broadcast %c1_i32_3 : i32 to vector<1x1xi32>
    %11 = arith.cmpi slt, %9, %10 : vector<1x1xi32>
    %cst = arith.constant 0.000000e+00 : f32
    %12 = vector.shape_cast %11 : vector<1x1xi1> to vector<1x1xi1>
    %13 = vector.broadcast %12 : vector<1x1xi1> to vector<1x256xi1>
    %14 = vector.broadcast %cst : f32 to vector<1x256xf32>
    %15 = arith.select %13, %3, %14 : vector<1x256xi1>, vector<1x256xf32>
    %16 = tpu.iota {dimensions = array<i32: 0>} : vector<128x256xi32>
    %17 = tpu.iota {dimensions = array<i32: 1>} : vector<128x256xi32>
    %c2_i32 = arith.constant 2 : i32
    %18 = vector.broadcast %c2_i32 : i32 to vector<128x256xi32>
    %19 = arith.muli %18, %16 : vector<128x256xi32>
    %c1_i32_4 = arith.constant 1 : i32
    %20 = vector.broadcast %c1_i32_4 : i32 to vector<128x256xi32>
    %21 = arith.addi %19, %20 : vector<128x256xi32>
    %22 = arith.cmpi eq, %17, %21 : vector<128x256xi32>
    %c2_i32_5 = arith.constant 2 : i32
    %23 = vector.broadcast %c2_i32_5 : i32 to vector<128x256xi32>
    %24 = arith.muli %23, %16 : vector<128x256xi32>
    %25 = arith.cmpi eq, %17, %24 : vector<128x256xi32>
    %cst_6 = arith.constant -1.000000e+00 : f32
    %cst_7 = arith.constant 0.000000e+00 : f32
    %26 = vector.broadcast %cst_6 : f32 to vector<128x256xf32>
    %27 = vector.broadcast %cst_7 : f32 to vector<128x256xf32>
    %28 = arith.select %25, %26, %27 : vector<128x256xi1>, vector<128x256xf32>
    %cst_8 = arith.constant 1.000000e+00 : f32
    %29 = vector.broadcast %cst_8 : f32 to vector<128x256xf32>
    %30 = arith.select %22, %29, %28 : vector<128x256xi1>, vector<128x256xf32>
    %31 = arith.truncf %30 : vector<128x256xf32> to vector<128x256xbf16>
    %c0_9 = arith.constant 0 : index
    %c0_10 = arith.constant 0 : index
    %32 = vector.load %arg3[%c0_9, %c0_10] : memref<1x128xi32, #tpu.memory_space<vmem>>, vector<1x128xi32>
    %33 = arith.sitofp %32 : vector<1x128xi32> to vector<1x128xbf16>
    %cst_11 = arith.constant dense<0.000000e+00> : vector<1x256xf32>
    %34 = tpu.matmul %33, %31, %cst_11 {dimension_numbers = #tpu.dot_dimension_numbers<[1], [0], [0], [1], [0, 0, 1, 1], [], []>} : vector<1x128xbf16>, vector<128x256xbf16>, vector<1x256xf32> -> vector<1x256xf32>
    %c0_12 = arith.constant 0 : index
    %c0_13 = arith.constant 0 : index
    %35 = vector.load %arg5[%c0_12, %c0_13] : memref<1x256xf32, #tpu.memory_space<vmem>>, vector<1x256xf32>
    %36 = arith.mulf %15, %34 : vector<1x256xf32>
    %cst_14 = arith.constant dense<0.000000e+00> : vector<256xf32>
    %37 = vector.multi_reduction <add>, %36, %cst_14 [0] : vector<1x256xf32> to vector<256xf32>
    %38 = vector.shape_cast %37 : vector<256xf32> to vector<1x256xf32>
    %39 = arith.addf %35, %38 : vector<1x256xf32>
    %c0_15 = arith.constant 0 : index
    %c0_16 = arith.constant 0 : index
    %40 = vector.load %arg5[%c0_15, %c0_16] : memref<1x256xf32, #tpu.memory_space<vmem>>, vector<1x256xf32>
    tpu.vector_store %arg5[%c0_15, %c0_16], %39 {strides = array<i32>} : memref<1x256xf32, #tpu.memory_space<vmem>>, vector<1x256xf32>,
    %c0_17 = arith.constant 0 : index
    %c0_18 = arith.constant 0 : index
    %41 = vector.load %arg6[%c0_17, %c0_18] : memref<1x256xf32, #tpu.memory_space<vmem>>, vector<1x256xf32>
    %cst_19 = arith.constant dense<0.000000e+00> : vector<256xf32>
    %42 = vector.multi_reduction <add>, %15, %cst_19 [0] : vector<1x256xf32> to vector<256xf32>
    %43 = vector.shape_cast %42 : vector<256xf32> to vector<1x256xf32>
    %44 = arith.addf %41, %43 : vector<1x256xf32>
    %c0_20 = arith.constant 0 : index
    %c0_21 = arith.constant 0 : index
    %45 = vector.load %arg6[%c0_20, %c0_21] : memref<1x256xf32, #tpu.memory_space<vmem>>, vector<1x256xf32>
    tpu.vector_store %arg6[%c0_20, %c0_21], %44 {strides = array<i32>} : memref<1x256xf32, #tpu.memory_space<vmem>>, vector<1x256xf32>,
    %c0_i32_22 = arith.constant 0 : i32
    %46 = arith.cmpi eq, %arg1, %c0_i32_22 : i32
    %47 = arith.extui %46 : i1 to i32
    %c0_i32_23 = arith.constant 0 : i32
    %48 = arith.cmpi ne, %47, %c0_i32_23 : i32
    scf.if %48 {
      %49 = tpu.iota {dimensions = array<i32: 1>} : vector<1x256xi32>
      %c2_i32_24 = arith.constant 2 : i32
      %c0_i32_25 = arith.constant 0 : i32
      %50 = arith.cmpi eq, %c2_i32_24, %c0_i32_25 : i32
      %c1_i32_26 = arith.constant 1 : i32
      %51 = arith.select %50, %c1_i32_26, %c2_i32_24 : i32
      %52 = vector.broadcast %51 : i32 to vector<1x256xi32>
      %53 = arith.remsi %49, %52 : vector<1x256xi32>
      %c0_i32_27 = arith.constant 0 : i32
      %54 = vector.broadcast %c0_i32_27 : i32 to vector<1x256xi32>
      %55 = arith.cmpi ne, %53, %54 : vector<1x256xi32>
      %c0_i32_28 = arith.constant 0 : i32
      %56 = vector.broadcast %c0_i32_28 : i32 to vector<1x256xi32>
      %57 = arith.cmpi slt, %53, %56 : vector<1x256xi32>
      %c0_i32_29 = arith.constant 0 : i32
      %58 = arith.cmpi slt, %51, %c0_i32_29 : i32
      %59 = vector.broadcast %58 : i1 to vector<1x256xi1>
      %60 = vector.broadcast %59 : vector<1x256xi1> to vector<1x256xi1>
      %61 = arith.xori %57, %60 : vector<1x256xi1>
      %62 = arith.andi %61, %55 : vector<1x256xi1>
      %63 = vector.broadcast %51 : i32 to vector<1x256xi32>
      %64 = arith.addi %53, %63 : vector<1x256xi32>
      %65 = arith.select %62, %64, %53 : vector<1x256xi1>, vector<1x256xi32>
      %c0_i32_30 = arith.constant 0 : i32
      %66 = vector.broadcast %c0_i32_30 : i32 to vector<1x256xi32>
      %67 = arith.cmpi eq, %65, %66 : vector<1x256xi32>
      %cst_31 = arith.constant 1.000000e+00 : f32
      %cst_32 = arith.constant 0.000000e+00 : f32
      %68 = vector.broadcast %cst_31 : f32 to vector<1x256xf32>
      %69 = vector.broadcast %cst_32 : f32 to vector<1x256xf32>
      %70 = arith.select %67, %68, %69 : vector<1x256xi1>, vector<1x256xf32>
      %c0_33 = arith.constant 0 : index
      %c0_34 = arith.constant 0 : index
      %71 = vector.load %arg6[%c0_33, %c0_34] : memref<1x256xf32, #tpu.memory_space<vmem>>, vector<1x256xf32>
      %72 = vector.shape_cast %71 : vector<1x256xf32> to vector<1x1x256xf32>
      %cst_35 = arith.constant dense<0.000000e+00> : vector<1xf32>
      %73 = vector.multi_reduction <add>, %72, %cst_35 [1, 2] : vector<1x1x256xf32> to vector<1xf32>
      %74 = vector.shape_cast %73 : vector<1xf32> to vector<1x1x1xf32>
      %75 = vector.extract %74[0, 0, 0] : f32 from vector<1x1x1xf32>
      %c0_36 = arith.constant 0 : index
      %c0_37 = arith.constant 0 : index
      %76 = vector.load %arg6[%c0_36, %c0_37] : memref<1x256xf32, #tpu.memory_space<vmem>>, vector<1x256xf32>
      %77 = arith.mulf %76, %70 : vector<1x256xf32>
      %78 = vector.shape_cast %77 : vector<1x256xf32> to vector<1x1x256xf32>
      %cst_38 = arith.constant dense<0.000000e+00> : vector<1xf32>
      %79 = vector.multi_reduction <add>, %78, %cst_38 [1, 2] : vector<1x1x256xf32> to vector<1xf32>
      %80 = vector.shape_cast %79 : vector<1xf32> to vector<1x1x1xf32>
      %81 = vector.extract %80[0, 0, 0] : f32 from vector<1x1x1xf32>
      %c0_39 = arith.constant 0 : index
      %c0_40 = arith.constant 0 : index
      %82 = vector.load %arg5[%c0_39, %c0_40] : memref<1x256xf32, #tpu.memory_space<vmem>>, vector<1x256xf32>
      %83 = vector.shape_cast %82 : vector<1x256xf32> to vector<1x1x256xf32>
      %cst_41 = arith.constant dense<0.000000e+00> : vector<1xf32>
      %84 = vector.multi_reduction <add>, %83, %cst_41 [1, 2] : vector<1x1x256xf32> to vector<1xf32>
      %85 = vector.shape_cast %84 : vector<1xf32> to vector<1x1x1xf32>
      %86 = vector.extract %85[0, 0, 0] : f32 from vector<1x1x1xf32>
      %87 = arith.addf %81, %86 : f32
      %88 = tpu.iota {dimensions = array<i32: 1>} : vector<1x8x128xi32>
      %c0_i32_42 = arith.constant 0 : i32
      %89 = vector.broadcast %c0_i32_42 : i32 to vector<1x8x128xi32>
      %90 = arith.cmpi eq, %88, %89 : vector<1x8x128xi32>
      %c1_i32_43 = arith.constant 1 : i32
      %91 = vector.broadcast %c1_i32_43 : i32 to vector<1x8x128xi32>
      %92 = arith.cmpi eq, %88, %91 : vector<1x8x128xi32>
      %cst_44 = arith.constant 0.000000e+00 : f32
      %93 = vector.broadcast %75 : f32 to vector<1x8x128xf32>
      %94 = vector.broadcast %cst_44 : f32 to vector<1x8x128xf32>
      %95 = arith.select %92, %93, %94 : vector<1x8x128xi1>, vector<1x8x128xf32>
      %96 = vector.broadcast %87 : f32 to vector<1x8x128xf32>
      %97 = arith.select %90, %96, %95 : vector<1x8x128xi1>, vector<1x8x128xf32>
      %c0_45 = arith.constant 0 : index
      %c0_46 = arith.constant 0 : index
      %c0_47 = arith.constant 0 : index
      %98 = vector.load %arg4[%c0_45, %c0_46, %c0_47] : memref<1x8x128xf32, #tpu.memory_space<vmem>>, vector<1x8x128xf32>
      tpu.vector_store %arg4[%c0_45, %c0_46, %c0_47], %97 {strides = array<i32>} : memref<1x8x128xf32, #tpu.memory_space<vmem>>, vector<1x8x128xf32>,
    } else {
    }
    return
  }
  func.func @transform_0(%arg0: i32, %arg1: i32) -> (i32, i32) {
    %c1_i32 = arith.constant 1 : i32
    %0 = arith.muli %arg0, %c1_i32 : i32
    %1 = arith.addi %0, %arg1 : i32
    %c0_i32 = arith.constant 0 : i32
    %2 = arith.minsi %1, %c0_i32 : i32
    %c0_i32_0 = arith.constant 0 : i32
    %c0_i32_1 = arith.constant 0 : i32
    return %2, %c0_i32_0 : i32, i32
  }
  func.func @transform_1(%arg0: i32, %arg1: i32) -> (i32, i32) {
    %c1_i32 = arith.constant 1 : i32
    %0 = arith.muli %arg0, %c1_i32 : i32
    %1 = arith.addi %0, %arg1 : i32
    %c0_i32 = arith.constant 0 : i32
    %2 = arith.minsi %1, %c0_i32 : i32
    %c0_i32_0 = arith.constant 0 : i32
    %c0_i32_1 = arith.constant 0 : i32
    return %2, %c0_i32_0 : i32, i32
  }
  func.func @transform_2(%arg0: i32, %arg1: i32) -> (i32, i32, i32) {
    %c0_i32 = arith.constant 0 : i32
    %c0_i32_0 = arith.constant 0 : i32
    %c0_i32_1 = arith.constant 0 : i32
    return %arg0, %c0_i32, %c0_i32_0 : i32, i32, i32
  }
}

</mosaic_0001>

<llo_original>
// kernel: tpu_custom_call.1
$region0: #{tpu_custom_call.1}
  #allocation0 [shape = 'u32[]', space=smem, size = 0x4, offset = 0x4, fixed_abs, tag = 'smem constant byte address 0x4 - core index']
  #allocation1 [shape = 'u32[144,128]{1,0:T(1,128)}', space=vmem, size = 0x12000, scoped, tag = 'internal scratch']
  #allocation2 [shape = 'f32[1,256]{1,0:T(1,128)}', space=vmem, size = 0x400, scoped, tag = 'scratch operand']
  #allocation3 [shape = 'f32[1,256]{1,0:T(1,128)}', space=vmem, size = 0x400, scoped, tag = 'scratch operand']
  %s0 = inlined_call_operand.hbm [shape: f32[1,256], index: 0, kind: input, shape index: {}]
  %s1 = inlined_call_operand.vmem [shape: s32[1,128], index: 1, kind: input, shape index: {}]
  %s2 = inlined_call_operand.hbm [shape: f32[2,8,128], index: 2, kind: output, shape index: {}]
  %s3 = sld [smem:[#allocation0]]
  $region53: #{tpu_custom_call.1} parent=0
    _
  %s5 = ssub.s32 1, %s3
  %s6 = scalar_select 0, %s5, %s3
  $region1: #{tpu_custom_call.1} parent=0
    #allocation4 [shape = 'u8[2048]{0}', space=vmem, size = 0x800, scoped, tag = 'input window, operand 0']
    #allocation5 [shape = 's32[2]{0}', space=sflag, size = 0x8, scoped, tag = 'scoped memory for tpu_custom_call.1']
    #allocation6 [shape = 's32[2]{0}', space=sflag, size = 0x8, scoped, tag = 'scoped memory for tpu_custom_call.1']
    #allocation7 [shape = 'u8[8192]{0}', space=vmem, size = 0x2000, scoped, tag = 'output window, operand 0']
    %7 = vsyncpa [#allocation5], 0
    %s8 = scalar_lea.sflag [#allocation5], 1
    %9 = vsyncpa %s8, 0
    %10 = vsyncpa [#allocation6], 0
    %s11 = scalar_lea.sflag [#allocation6], 1
    %12 = vsyncpa %s11, 0
    loop: start=0, step=1, limit=4
    $region2: #{tpu_custom_call.1} parent=1 // loop_pre_header
      _
    $region3: #{tpu_custom_call.1} parent=1 // loop_header
      %s14 = sphi 0, %s18
      %p15 = scmp.ge.s32.totalorder %s14, 4
      %s21 = sphi 0, %s33
      %s22 = sphi 0, %s29
      %s23 = sphi 0, %s21
      %s24 = sphi 0, %s22
      %s25 = sphi 0, %s23
      %s26 = sphi 0, %s24
      %s42 = sphi 0, %s44
      %s45 = sphi 0, %s42
      %s46 = sphi 0, %s45
      %s62 = sphi 0, %s46
      %s74 = sphi 0, %s76
      %s77 = sphi 0, %s74
      %s78 = sphi 0, %s77
      %s94 = sphi 0, %s78
      %s100 = sphi 0, %s102
      %s103 = sphi 0, %s100
      %s104 = sphi 0, %s103
      %s120 = sphi 0, %s104
    $region4: #{tpu_custom_call.1} parent=1 // loop_header_branch
      %17 = sbr.rel (%p15) target = $region8
    $region5: #{tpu_custom_call.1} parent=1 // loop_body
      %s19 = ssub.s32 %s14, 1
      %s20 = ssub.s32 %s14, 2
      %s27 = sadd.s32 1, %s22
      %p28 = scmp.ge.s32.totalorder %s27, 1
      %s29 = scalar_select %p28, 0, %s27
      %s30 = sadd.s32 1, %s21
      %s31 = scalar_select %p28, %s30, %s21
      %p32 = scmp.ge.s32.totalorder %s31, 2
      %s33 = scalar_select %p32, 0, %s31
      %s34 = sadd.s32 %s21, %s22
      %p35 = scmp.lt.s32.totalorder %s34, 0
      %s36 = scalar_select %p35, %s34, 0
      %s37 = sadd.s32 %s33, %s29
      %p38 = scmp.lt.s32.totalorder %s37, 0
      %s39 = scalar_select %p38, %s37, 0
      %s40 = ssub.s32 %s36, %s39
      %p41 = scmp.eq.s32.totalorder %s40, 0
      %s43 = sadd.s32 %s42, 1
      %s44 = scalar_select %p41, %s42, %s43
      %p47 = pneg %p41
      %p48 = scmp.eq.s32.totalorder %s14, 1
      %p49 = por %p47, %p48
      %p50 = scmp.ne.s32.totalorder %s42, %s45
      %p51 = scmp.eq.s32.totalorder %s14, 0
      %p52 = por %p50, %p51
      %p53 = scmp.ne.s32.totalorder %s42, %s45
      %p54 = scmp.eq.s32.totalorder %s19, 1
      %p55 = por %p53, %p54
      %p56 = scmp.ne.s32.totalorder %s45, %s46
      %p57 = scmp.eq.s32.totalorder %s19, 0
      %p58 = por %p56, %p57
      %p59 = scmp.ne.s32.totalorder %s45, %s46
      %p60 = scmp.eq.s32.totalorder %s20, 1
      %p61 = por %p59, %p60
      %p63 = scmp.ne.s32.totalorder %s46, %s62
      %p64 = scmp.eq.s32.totalorder %s20, 0
      %p65 = por %p63, %p64
      %s66 = sadd.s32 %s21, %s22
      %p67 = scmp.lt.s32.totalorder %s66, 0
      %s68 = scalar_select %p67, %s66, 0
      %s69 = sadd.s32 %s33, %s29
      %p70 = scmp.lt.s32.totalorder %s69, 0
      %s71 = scalar_select %p70, %s69, 0
      %s72 = ssub.s32 %s68, %s71
      %p73 = scmp.eq.s32.totalorder %s72, 0
      %s75 = sadd.s32 %s74, 1
      %s76 = scalar_select %p73, %s74, %s75
      %p79 = pneg %p73
      %p80 = scmp.eq.s32.totalorder %s14, 1
      %p81 = por %p79, %p80
      %p82 = scmp.ne.s32.totalorder %s74, %s77
      %p83 = scmp.eq.s32.totalorder %s14, 0
      %p84 = por %p82, %p83
      %p85 = scmp.ne.s32.totalorder %s74, %s77
      %p86 = scmp.eq.s32.totalorder %s19, 1
      %p87 = por %p85, %p86
      %p88 = scmp.ne.s32.totalorder %s77, %s78
      %p89 = scmp.eq.s32.totalorder %s19, 0
      %p90 = por %p88, %p89
      %p91 = scmp.ne.s32.totalorder %s77, %s78
      %p92 = scmp.eq.s32.totalorder %s20, 1
      %p93 = por %p91, %p92
      %p95 = scmp.ne.s32.totalorder %s78, %s94
      %p96 = scmp.eq.s32.totalorder %s20, 0
      %p97 = por %p95, %p96
      %s98 = ssub.s32 %s21, %s33
      %p99 = scmp.eq.s32.totalorder %s98, 0
      %s101 = sadd.s32 %s100, 1
      %s102 = scalar_select %p99, %s100, %s101
      %p105 = pneg %p99
      %p106 = scmp.eq.s32.totalorder %s14, 1
      %p107 = por %p105, %p106
      %p108 = scmp.ne.s32.totalorder %s100, %s103
      %p109 = scmp.eq.s32.totalorder %s14, 0
      %p110 = por %p108, %p109
      %p111 = scmp.ne.s32.totalorder %s100, %s103
      %p112 = scmp.eq.s32.totalorder %s19, 1
      %p113 = por %p111, %p112
      %p114 = scmp.ne.s32.totalorder %s103, %s104
      %p115 = scmp.eq.s32.totalorder %s19, 0
      %p116 = por %p114, %p115
      %p117 = scmp.ne.s32.totalorder %s103, %s104
      %p118 = scmp.eq.s32.totalorder %s20, 1
      %p119 = por %p117, %p118
      %p121 = scmp.ne.s32.totalorder %s104, %s120
      %p122 = scmp.eq.s32.totalorder %s20, 0
      %p123 = por %p121, %p122
      %p124 = scmp.le.s32.totalorder 1, %s14
      %p125 = scmp.lt.s32.totalorder %s14, 3
      %p126 = pnand %p124, %p125
      %p127 = pneg %p126
      // Predicated region
      $region9: #{tpu_custom_call.1} parent=5 // pred_check
        _
      $region10: #{tpu_custom_call.1} parent=5 // pred_check_branch
        %129 = sbr.rel (%p126) target = $region12
      $region11: #{tpu_custom_call.1} parent=5 // pred_region
        %s130 = ssub.s32 %s14, 1
      $region12: #{tpu_custom_call.1} parent=5 // pred_fallthru
        _
      %p131 = scmp.lt.s32.totalorder %s14, 2
      // Predicated region
      $region13: #{tpu_custom_call.1} parent=5 // pred_check
        %p132 = pneg %p131
      $region14: #{tpu_custom_call.1} parent=5 // pred_check_branch
        %134 = sbr.rel (%p132) target = $region16
      $region15: #{tpu_custom_call.1} parent=5 // pred_region
        // Predicated region
        $region17: #{tpu_custom_call.1} parent=15 // pred_check
          %p135 = pneg %p52
        $region18: #{tpu_custom_call.1} parent=15 // pred_check_branch
          %137 = sbr.rel (%p135) target = $region20
        $region19: #{tpu_custom_call.1} parent=15 // pred_region
          %s138 = sand.u32 %s42, 1
          %s139 = scalar_lea.sflag [#allocation5], %s138
          %s140 = sand.u32 %s42, 1
          %s141 = smul.addr %s140, 2
          %s142 = scalar_lea.vmem [#allocation4], %s141
          %s143 = sadd.s32 %s21, %s22
          %p144 = scmp.lt.s32.totalorder %s143, 0
          %s145 = scalar_select %p144, %s143, 0
          %s147 = ssub.s32 32, 32
          %148 = vsyncadd %s139, %s147
          %s149 = smul.addr %s145, 2
          %s150 = smul.addr %s149, 16
          %s151 = scalar_lea.hbm %s0, %s150
          %s153 = sshll.u32 %s142, 4
          %s154 = int_to_ptr.vmem [resolvable:$true] %s153
          %156 = dma.hbm_to_vmem [thread:$0]  %s151, 32, %s154, %s139
        $region20: #{tpu_custom_call.1} parent=15 // pred_fallthru
          _
        // Predicated region
        $region21: #{tpu_custom_call.1} parent=15 // pred_check
          %p157 = pneg %p84
        $region22: #{tpu_custom_call.1} parent=15 // pred_check_branch
          %159 = sbr.rel (%p157) target = $region24
        $region23: #{tpu_custom_call.1} parent=15 // pred_region
          %s160 = sadd.s32 %s21, %s22
          %p161 = scmp.lt.s32.totalorder %s160, 0
          %s162 = scalar_select %p161, %s160, 0
          %p163 = scmp.lt.s32.totalorder %s162, 0
          %s164 = scalar_select %p163, %s162, 0
          %s165 = scalar_lea.vmem %s1, %s164
          %s166 = sadd.s32 %s21, %s22
          %p167 = scmp.lt.s32.totalorder %s166, 0
          %s168 = scalar_select %p167, %s166, 0
        $region24: #{tpu_custom_call.1} parent=15 // pred_fallthru
          _
      $region16: #{tpu_custom_call.1} parent=5 // pred_fallthru
        _
      %p169 = scmp.le.s32.totalorder 1, %s14
      %p170 = scmp.lt.s32.totalorder %s14, 3
      %p171 = pnand %p169, %p170
      %p172 = pneg %p171
      // Predicated region
      $region25: #{tpu_custom_call.1} parent=5 // pred_check
        _
      $region26: #{tpu_custom_call.1} parent=5 // pred_check_branch
        %174 = sbr.rel (%p171) target = $region28
      $region27: #{tpu_custom_call.1} parent=5 // pred_region
        %s175 = ssub.s32 %s14, 1
        %s176 = sand.u32 %s45, 1
        %s177 = scalar_lea.sflag [#allocation5], %s176
        %s178 = sand.u32 %s45, 1
        %s179 = smul.addr %s178, 2
        %s180 = scalar_lea.vmem [#allocation4], %s179
        // Predicated region
        $region29: #{tpu_custom_call.1} parent=27 // pred_check
          %p181 = pneg %p58
        $region30: #{tpu_custom_call.1} parent=27 // pred_check_branch
          %183 = sbr.rel (%p181) target = $region32
        $region31: #{tpu_custom_call.1} parent=27 // pred_region
          %184 = dma.done %s177, 32
        $region32: #{tpu_custom_call.1} parent=27 // pred_fallthru
          _
        %s185 = sand.u32 %s45, 1
        %s186 = scalar_lea.sflag [#allocation5], %s185
        %s187 = sand.u32 %s45, 1
        %s188 = smul.addr %s187, 2
        %s189 = scalar_lea.vmem [#allocation4], %s188
        %p190 = pneg %p58
        %p191 = pneg %p55
        %s192 = sadd.s32 %s23, %s24
        %p193 = scmp.lt.s32.totalorder %s192, 0
        %s194 = scalar_select %p193, %s192, 0
        %p195 = scmp.lt.s32.totalorder %s194, 0
        %s196 = scalar_select %p195, %s194, 0
        %s197 = scalar_lea.vmem %s1, %s196
        %p198 = pneg %p90
        %p199 = pneg %p87
        %p200 = pneg %p116
        %p201 = pneg %p113
        %s202 = sand.u32 %s103, 1
        %s203 = scalar_lea.sflag [#allocation6], %s202
        %s204 = sand.u32 %s103, 1
        %s205 = smul.addr %s204, 8
        %s206 = scalar_lea.vmem [#allocation7], %s205
        %s207 = sadd.s32 %s23, %s24
        %p208 = scmp.lt.s32.totalorder %s207, 0
        %s209 = scalar_select %p208, %s207, 0
        %s210 = sadd.s32 %s23, %s24
        %p211 = scmp.lt.s32.totalorder %s210, 0
        %s212 = scalar_select %p211, %s210, 0
        %p213 = scmp.lt.s32.totalorder %s212, 0
        %s214 = scalar_select %p213, %s212, 0
        %s215 = scalar_lea.vmem %s1, %s214
        %s216 = sadd.s32 %s23, %s24
        %p217 = scmp.lt.s32.totalorder %s216, 0
        %s218 = scalar_select %p217, %s216, 0
        %p220 = scmp.eq.s32.totalorder %s24, 0
        // Predicated region
        $region33: #{tpu_custom_call.1} parent=27 // pred_check
          %p221 = pneg %p220
        $region34: #{tpu_custom_call.1} parent=27 // pred_check_branch
          %223 = sbr.rel (%p221) target = $region36
        $region35: #{tpu_custom_call.1} parent=27 // pred_region
          %v224 = vlaneseq
          %vm225 = vcmp.ge.s32.totalorder %v224, 0
          %vm226 = vcmp.lt.s32.totalorder %v224, 256
          %vm227 = vmand %vm225, %vm226
          %228 = vst.msk [vmem:[#allocation2] sm:$0x3] %vm227, 0.0
          %229 = vst.msk [vmem:[#allocation3] sm:$0x3] %vm227, 0.0
        $region36: #{tpu_custom_call.1} parent=27 // pred_fallthru
          _
        %v230 = vld [vmem:[%s180] sm:$0x3]
        %s231 = sadd.s32 %s23, %s24
        %v232 = vlaneseq
        %v233 = vshrl.u32 %v232, 7
        %v234 = vstv %s231
        %v235 = vadd.s32 %v233, %v234
        %vm236 = vcmp.lt.s32.totalorder %v235, 1
        %v237 = vsel %vm236, 1, 0
        %vm238 = vcmp.eq.s32.totalorder %v237, 1
        %v240 = vlaneseq
        %v241 = vshrl.u32 %v240, 7
        %v242 = vsub.s32 0, %v241
        %v243 = vrot.slane %v230, %v242
        %v244 = vlaneseq
        %v245 = vshrl.u32 %v244, 7
        %v246 = vsub.s32 1, %v245
        %v247 = vrot.slane %v230, %v246
        %v250 = vsel %vm238, %v243, 0.0
        %v251 = vsel %vm238, %v247, 0.0
        %v252 = vadd.s32 %v233, 8
        %v253 = vadd.s32 %v233, 16
        %v254 = vadd.s32 %v233, 24
        %v255 = vadd.s32 %v233, 32
        %v256 = vadd.s32 %v233, 40
        %v257 = vadd.s32 %v233, 48
        %v258 = vadd.s32 %v233, 56
        %v259 = vadd.s32 %v233, 64
        %v260 = vadd.s32 %v233, 72
        %v261 = vadd.s32 %v233, 80
        %v262 = vadd.s32 %v233, 88
        %v263 = vadd.s32 %v233, 96
        %v264 = vadd.s32 %v233, 104
        %v265 = vadd.s32 %v233, 112
        %v266 = vadd.s32 %v233, 120
        %v267 = vlaneseq
        %v268 = vand.u32 %v267, 127
        %v269 = vadd.s32 %v268, 128
        %v270 = vmul.u32 %v233, 2
        %v271 = vmul.u32 %v252, 2
        %v272 = vmul.u32 %v253, 2
        %v273 = vmul.u32 %v254, 2
        %v274 = vmul.u32 %v255, 2
        %v275 = vmul.u32 %v256, 2
        %v276 = vmul.u32 %v257, 2
        %v277 = vmul.u32 %v258, 2
        %v278 = vmul.u32 %v259, 2
        %v279 = vmul.u32 %v260, 2
        %v280 = vmul.u32 %v261, 2
        %v281 = vmul.u32 %v262, 2
        %v282 = vmul.u32 %v263, 2
        %v283 = vmul.u32 %v264, 2
        %v284 = vmul.u32 %v265, 2
        %v285 = vmul.u32 %v266, 2
        %v286 = vadd.s32 %v270, 1
        %v287 = vadd.s32 %v271, 1
        %v288 = vadd.s32 %v272, 1
        %v289 = vadd.s32 %v273, 1
        %v290 = vadd.s32 %v274, 1
        %v291 = vadd.s32 %v275, 1
        %v292 = vadd.s32 %v276, 1
        %v293 = vadd.s32 %v277, 1
        %v294 = vadd.s32 %v278, 1
        %v295 = vadd.s32 %v279, 1
        %v296 = vadd.s32 %v280, 1
        %v297 = vadd.s32 %v281, 1
        %v298 = vadd.s32 %v282, 1
        %v299 = vadd.s32 %v283, 1
        %v300 = vadd.s32 %v284, 1
        %v301 = vadd.s32 %v285, 1
        %vm302 = vcmp.eq.s32.totalorder %v268, %v286
        %vm303 = vcmp.eq.s32.totalorder %v269, %v286
        %vm304 = vcmp.eq.s32.totalorder %v268, %v287
        %vm305 = vcmp.eq.s32.totalorder %v269, %v287
        %vm306 = vcmp.eq.s32.totalorder %v268, %v288
        %vm307 = vcmp.eq.s32.totalorder %v269, %v288
        %vm308 = vcmp.eq.s32.totalorder %v268, %v289
        %vm309 = vcmp.eq.s32.totalorder %v269, %v289
        %vm310 = vcmp.eq.s32.totalorder %v268, %v290
        %vm311 = vcmp.eq.s32.totalorder %v269, %v290
        %vm312 = vcmp.eq.s32.totalorder %v268, %v291
        %vm313 = vcmp.eq.s32.totalorder %v269, %v291
        %vm314 = vcmp.eq.s32.totalorder %v268, %v292
        %vm315 = vcmp.eq.s32.totalorder %v269, %v292
        %vm316 = vcmp.eq.s32.totalorder %v268, %v293
        %vm317 = vcmp.eq.s32.totalorder %v269, %v293
        %vm318 = vcmp.eq.s32.totalorder %v268, %v294
        %vm319 = vcmp.eq.s32.totalorder %v269, %v294
        %vm320 = vcmp.eq.s32.totalorder %v268, %v295
        %vm321 = vcmp.eq.s32.totalorder %v269, %v295
        %vm322 = vcmp.eq.s32.totalorder %v268, %v296
        %vm323 = vcmp.eq.s32.totalorder %v269, %v296
        %vm324 = vcmp.eq.s32.totalorder %v268, %v297
        %vm325 = vcmp.eq.s32.totalorder %v269, %v297
        %vm326 = vcmp.eq.s32.totalorder %v268, %v298
        %vm327 = vcmp.eq.s32.totalorder %v269, %v298
        %vm328 = vcmp.eq.s32.totalorder %v268, %v299
        %vm329 = vcmp.eq.s32.totalorder %v269, %v299
        %vm330 = vcmp.eq.s32.totalorder %v268, %v300
        %vm331 = vcmp.eq.s32.totalorder %v269, %v300
        %vm332 = vcmp.eq.s32.totalorder %v268, %v301
        %vm333 = vcmp.eq.s32.totalorder %v269, %v301
        %vm334 = vcmp.eq.s32.totalorder %v268, %v270
        %vm335 = vcmp.eq.s32.totalorder %v269, %v270
        %vm336 = vcmp.eq.s32.totalorder %v268, %v271
        %vm337 = vcmp.eq.s32.totalorder %v269, %v271
        %vm338 = vcmp.eq.s32.totalorder %v268, %v272
        %vm339 = vcmp.eq.s32.totalorder %v269, %v272
        %vm340 = vcmp.eq.s32.totalorder %v268, %v273
        %vm341 = vcmp.eq.s32.totalorder %v269, %v273
        %vm342 = vcmp.eq.s32.totalorder %v268, %v274
        %vm343 = vcmp.eq.s32.totalorder %v269, %v274
        %vm344 = vcmp.eq.s32.totalorder %v268, %v275
        %vm345 = vcmp.eq.s32.totalorder %v269, %v275
        %vm346 = vcmp.eq.s32.totalorder %v268, %v276
        %vm347 = vcmp.eq.s32.totalorder %v269, %v276
        %vm348 = vcmp.eq.s32.totalorder %v268, %v277
        %vm349 = vcmp.eq.s32.totalorder %v269, %v277
        %vm350 = vcmp.eq.s32.totalorder %v268, %v278
        %vm351 = vcmp.eq.s32.totalorder %v269, %v278
        %vm352 = vcmp.eq.s32.totalorder %v268, %v279
        %vm353 = vcmp.eq.s32.totalorder %v269, %v279
        %vm354 = vcmp.eq.s32.totalorder %v268, %v280
        %vm355 = vcmp.eq.s32.totalorder %v269, %v280
        %vm356 = vcmp.eq.s32.totalorder %v268, %v281
        %vm357 = vcmp.eq.s32.totalorder %v269, %v281
        %vm358 = vcmp.eq.s32.totalorder %v268, %v282
        %vm359 = vcmp.eq.s32.totalorder %v269, %v282
        %vm360 = vcmp.eq.s32.totalorder %v268, %v283
        %vm361 = vcmp.eq.s32.totalorder %v269, %v283
        %vm362 = vcmp.eq.s32.totalorder %v268, %v284
        %vm363 = vcmp.eq.s32.totalorder %v269, %v284
        %vm364 = vcmp.eq.s32.totalorder %v268, %v285
        %vm365 = vcmp.eq.s32.totalorder %v269, %v285
        %v366 = vsel %vm334, -1.0, 0.0
        %v367 = vsel %vm335, -1.0, 0.0
        %v368 = vsel %vm336, -1.0, 0.0
        %v369 = vsel %vm337, -1.0, 0.0
        %v370 = vsel %vm338, -1.0, 0.0
        %v371 = vsel %vm339, -1.0, 0.0
        %v372 = vsel %vm340, -1.0, 0.0
        %v373 = vsel %vm341, -1.0, 0.0
        %v374 = vsel %vm342, -1.0, 0.0
        %v375 = vsel %vm343, -1.0, 0.0
        %v376 = vsel %vm344, -1.0, 0.0
        %v377 = vsel %vm345, -1.0, 0.0
        %v378 = vsel %vm346, -1.0, 0.0
        %v379 = vsel %vm347, -1.0, 0.0
        %v380 = vsel %vm348, -1.0, 0.0
        %v381 = vsel %vm349, -1.0, 0.0
        %v382 = vsel %vm350, -1.0, 0.0
        %v383 = vsel %vm351, -1.0, 0.0
        %v384 = vsel %vm352, -1.0, 0.0
        %v385 = vsel %vm353, -1.0, 0.0
        %v386 = vsel %vm354, -1.0, 0.0
        %v387 = vsel %vm355, -1.0, 0.0
        %v388 = vsel %vm356, -1.0, 0.0
        %v389 = vsel %vm357, -1.0, 0.0
        %v390 = vsel %vm358, -1.0, 0.0
        %v391 = vsel %vm359, -1.0, 0.0
        %v392 = vsel %vm360, -1.0, 0.0
        %v393 = vsel %vm361, -1.0, 0.0
        %v394 = vsel %vm362, -1.0, 0.0
        %v395 = vsel %vm363, -1.0, 0.0
        %v396 = vsel %vm364, -1.0, 0.0
        %v397 = vsel %vm365, -1.0, 0.0
        %v398 = vsel %vm302, 1.0, %v366
        %v399 = vsel %vm303, 1.0, %v367
        %v400 = vsel %vm304, 1.0, %v368
        %v401 = vsel %vm305, 1.0, %v369
        %v402 = vsel %vm306, 1.0, %v370
        %v403 = vsel %vm307, 1.0, %v371
        %v404 = vsel %vm308, 1.0, %v372
        %v405 = vsel %vm309, 1.0, %v373
        %v406 = vsel %vm310, 1.0, %v374
        %v407 = vsel %vm311, 1.0, %v375
        %v408 = vsel %vm312, 1.0, %v376
        %v409 = vsel %vm313, 1.0, %v377
        %v410 = vsel %vm314, 1.0, %v378
        %v411 = vsel %vm315, 1.0, %v379
        %v412 = vsel %vm316, 1.0, %v380
        %v413 = vsel %vm317, 1.0, %v381
        %v414 = vsel %vm318, 1.0, %v382
        %v415 = vsel %vm319, 1.0, %v383
        %v416 = vsel %vm320, 1.0, %v384
        %v417 = vsel %vm321, 1.0, %v385
        %v418 = vsel %vm322, 1.0, %v386
        %v419 = vsel %vm323, 1.0, %v387
        %v420 = vsel %vm324, 1.0, %v388
        %v421 = vsel %vm325, 1.0, %v389
        %v422 = vsel %vm326, 1.0, %v390
        %v423 = vsel %vm327, 1.0, %v391
        %v424 = vsel %vm328, 1.0, %v392
        %v425 = vsel %vm329, 1.0, %v393
        %v426 = vsel %vm330, 1.0, %v394
        %v427 = vsel %vm331, 1.0, %v395
        %v428 = vsel %vm332, 1.0, %v396
        %v429 = vsel %vm333, 1.0, %v397
        %v430 = vpack.c.bf16 %v400, %v398
        %v431 = vpack.c.bf16 %v401, %v399
        %v432 = vpack.c.bf16 %v404, %v402
        %v433 = vpack.c.bf16 %v405, %v403
        %v434 = vpack.c.bf16 %v408, %v406
        %v435 = vpack.c.bf16 %v409, %v407
        %v436 = vpack.c.bf16 %v412, %v410
        %v437 = vpack.c.bf16 %v413, %v411
        %v438 = vpack.c.bf16 %v416, %v414
        %v439 = vpack.c.bf16 %v417, %v415
        %v440 = vpack.c.bf16 %v420, %v418
        %v441 = vpack.c.bf16 %v421, %v419
        %v442 = vpack.c.bf16 %v424, %v422
        %v443 = vpack.c.bf16 %v425, %v423
        %v444 = vpack.c.bf16 %v428, %v426
        %v445 = vpack.c.bf16 %v429, %v427
        %v446 = vld [vmem:[%s215] sm:$0x1]
        %v447 = vcvt.s32.f32 %v446
        %v448 = vpack.c.bf16 %v447, %v447
        %449 = vmatprep.subr.bf16.mxu0 %v431
        %450 = vmatpush1.bf16.msra.mxu0 %v430
        %451 = vmatprep.subr.bf16.mxu0 %v433
        %452 = vmatpush1.bf16.msra.mxu0 %v432
        %453 = vmatprep.subr.bf16.mxu0 %v435
        %454 = vmatpush1.bf16.msra.mxu0 %v434
        %455 = vmatprep.subr.bf16.mxu0 %v437
        %456 = vmatpush1.bf16.msra.mxu0 %v436
        %457 = vmatprep.subr.bf16.mxu0 %v439
        %458 = vmatpush1.bf16.msra.mxu0 %v438
        %459 = vmatprep.subr.bf16.mxu0 %v441
        %460 = vmatpush1.bf16.msra.mxu0 %v440
        %461 = vmatprep.subr.bf16.mxu0 %v443
        %462 = vmatpush1.bf16.msra.mxu0 %v442
        %463 = vmatprep.subr.bf16.mxu0 %v445
        %464 = vmatpush1.bf16.msra.mxu0 %v444
        %465 = vmatprep.subr.bf16.mxu0 0
        %466 = vmatpush1.bf16.msra.mxu0 0
        %467 = vmatprep.subr.bf16.mxu0 0
        %468 = vmatpush1.bf16.msra.mxu0 0
        %469 = vmatprep.subr.bf16.mxu0 0
        %470 = vmatpush1.bf16.msra.mxu0 0
        %471 = vmatprep.subr.bf16.mxu0 0
        %472 = vmatpush1.bf16.msra.mxu0 0
        %473 = vmatprep.subr.bf16.mxu0 0
        %474 = vmatpush1.bf16.msra.mxu0 0
        %475 = vmatprep.subr.bf16.mxu0 0
        %476 = vmatpush1.bf16.msra.mxu0 0
        %477 = vmatprep.subr.bf16.mxu0 0
        %478 = vmatpush1.bf16.msra.mxu0 0
        %479 = vmatprep.subr.bf16.mxu0 0
        %480 = vmatpush1.bf16.msra.mxu0 0
        %481 = vmatprep.mubr.bf16.mxu0 0
        %482 = vmatmul.mubr.bf16.gmra.mrb[0].mxu0 %v448
        %v483 = vpop.f32.mrb[0].mxu0
        %v484 = vadd.f32 0.0, %v483
        %v485 = vpop.f32.mrb[0].mxu0
        %v486 = vadd.f32 0.0, %v485
        %v487 = vpop.f32.mrb[0].mxu0
        %v488 = vpop.f32.mrb[0].mxu0
        %489 = vdwg.mxu0
        %v490 = vld [vmem:[#allocation2] sm:$0x3]
        %v491 = vmul.f32 %v250, %v484
        %v492 = vmul.f32 %v251, %v486
        %v493 = vadd.f32 %v491, 0.0
        %v494 = vadd.f32 %v492, 0.0
        %v497 = vcombine.low %v493, %v494
        %v499 = vunpack.c.l.s4 1966171168
        %v500 = vunpack.c.0.s8 %v499
        %v501 = vlaneseq
        %v502 = vshrl.u32 %v501, 7
        %v503 = vsub.s32 %v500, %v502
        %v504 = vrot.slane %v497, %v503
        %v506 = vunpack.c.l.s4 1966171168
        %v507 = vunpack.c.0.s8 %v506
        %v508 = vlaneseq
        %v509 = vshrl.u32 %v508, 7
        %v510 = vsub.s32 %v507, %v509
        %v511 = vrot.slane %v504, %v510
        %v513 = vadd.f32 %v490, %v511
        %v514 = vlaneseq
        %vm515 = vcmp.ge.s32.totalorder %v514, 0
        %vm516 = vcmp.lt.s32.totalorder %v514, 256
        %vm517 = vmand %vm515, %vm516
        %518 = vst.msk [vmem:[#allocation2] sm:$0x3] %vm517, %v513
        %v519 = vld [vmem:[#allocation3] sm:$0x3]
        %v520 = vadd.f32 %v250, 0.0
        %v521 = vadd.f32 %v251, 0.0
        %v524 = vcombine.low %v520, %v521
        %v526 = vunpack.c.l.s4 1966171168
        %v527 = vunpack.c.0.s8 %v526
        %v528 = vlaneseq
        %v529 = vshrl.u32 %v528, 7
        %v530 = vsub.s32 %v527, %v529
        %v531 = vrot.slane %v524, %v530
        %v533 = vunpack.c.l.s4 1966171168
        %v534 = vunpack.c.0.s8 %v533
        %v535 = vlaneseq
        %v536 = vshrl.u32 %v535, 7
        %v537 = vsub.s32 %v534, %v536
        %v538 = vrot.slane %v531, %v537
        %v540 = vadd.f32 %v519, %v538
        %541 = vst.msk [vmem:[#allocation3] sm:$0x3] %vm517, %v540
        // Predicated region
        $region37: #{tpu_custom_call.1} parent=27 // pred_check
          %p542 = pneg %p220
        $region38: #{tpu_custom_call.1} parent=27 // pred_check_branch
          %544 = sbr.rel (%p542) target = $region40
        $region39: #{tpu_custom_call.1} parent=27 // pred_region
          %vm545 = vcmp.lt.s32.totalorder %v268, 0
          %v546 = vsub.s32 0, %v268
          %v547 = vsel %vm545, %v546, %v268
          %v548 = vshrl.u32 %v547, 1
          %v549 = vand.u32 %v547, 1
          %v550 = vsub.s32 0, %v549
          %v551 = vsel %vm545, %v550, %v549
          %vm552 = vcmp.lt.s32.totalorder %v269, 0
          %v553 = vsub.s32 0, %v269
          %v554 = vsel %vm552, %v553, %v269
          %v555 = vshrl.u32 %v554, 1
          %v556 = vand.u32 %v554, 1
          %v557 = vsub.s32 0, %v556
          %v558 = vsel %vm552, %v557, %v556
          %vm559 = vcmp.ne.s32.totalorder %v551, 0
          %vm560 = vcmp.ne.s32.totalorder %v558, 0
          %vm561 = vcmp.lt.s32.totalorder %v551, 0
          %vm562 = vcmp.lt.s32.totalorder %v558, 0
          %vm563 = vmand %vm561, %vm559
          %vm564 = vmand %vm562, %vm560
          %v565 = vadd.s32 %v551, 2
          %v566 = vadd.s32 %v558, 2
          %v567 = vsel %vm563, %v565, %v551
          %v568 = vsel %vm564, %v566, %v558
          %vm569 = vcmp.eq.s32.totalorder %v567, 0
          %vm570 = vcmp.eq.s32.totalorder %v568, 0
          %v571 = vsel %vm569, 1.0, 0.0
          %v572 = vsel %vm570, 1.0, 0.0
          %v573 = vld [vmem:[#allocation3] sm:$0x3]
          %v575 = vlaneseq
          %v576 = vshrl.u32 %v575, 7
          %v577 = vsub.s32 0, %v576
          %v578 = vrot.slane %v573, %v577
          %v579 = vlaneseq
          %v580 = vshrl.u32 %v579, 7
          %v581 = vsub.s32 1, %v580
          %v582 = vrot.slane %v573, %v581
          %vm585 = vcmask 1040384
          %v586 = vsel %vm585, %v578, 0.0
          %v587 = vsel %vm585, %v582, 0.0
          %v588 = vadd.f32 %v586, %v587
          %589 = vadd.xlane.f32.xlu0 %v588
          %v590 = vpop.xlane.xlu0 %589
          %v591 = vrot.slane %v590, 4
          %v592 = vadd.f32 %v590, %v591
          %v593 = vrot.slane %v592, 2
          %v594 = vadd.f32 %v592, %v593
          %v595 = vrot.slane %v594, 1
          %v596 = vadd.f32 %v594, %v595
          %s597 = vtos %v596
          %v600 = vcombine.low %v571, %v572
          %v602 = vunpack.c.l.s4 1966171168
          %v603 = vunpack.c.0.s8 %v602
          %v604 = vlaneseq
          %v605 = vshrl.u32 %v604, 7
          %v606 = vsub.s32 %v603, %v605
          %v607 = vrot.slane %v600, %v606
          %v609 = vunpack.c.l.s4 1966171168
          %v610 = vunpack.c.0.s8 %v609
          %v611 = vlaneseq
          %v612 = vshrl.u32 %v611, 7
          %v613 = vsub.s32 %v610, %v612
          %v614 = vrot.slane %v607, %v613
          %v616 = vmul.f32 %v573, %v614
          %v618 = vlaneseq
          %v619 = vshrl.u32 %v618, 7
          %v620 = vsub.s32 0, %v619
          %v621 = vrot.slane %v616, %v620
          %v622 = vlaneseq
          %v623 = vshrl.u32 %v622, 7
          %v624 = vsub.s32 1, %v623
          %v625 = vrot.slane %v616, %v624
          %v628 = vsel %vm585, %v621, 0.0
          %v629 = vsel %vm585, %v625, 0.0
          %v630 = vadd.f32 %v628, %v629
          %631 = vadd.xlane.f32.xlu0 %v630
          %v632 = vpop.xlane.xlu0 %631
          %v633 = vrot.slane %v632, 4
          %v634 = vadd.f32 %v632, %v633
          %v635 = vrot.slane %v634, 2
          %v636 = vadd.f32 %v634, %v635
          %v637 = vrot.slane %v636, 1
          %v638 = vadd.f32 %v636, %v637
          %s639 = vtos %v638
          %v640 = vld [vmem:[#allocation2] sm:$0x3]
          %v642 = vlaneseq
          %v643 = vshrl.u32 %v642, 7
          %v644 = vsub.s32 0, %v643
          %v645 = vrot.slane %v640, %v644
          %v646 = vlaneseq
          %v647 = vshrl.u32 %v646, 7
          %v648 = vsub.s32 1, %v647
          %v649 = vrot.slane %v640, %v648
          %v652 = vsel %vm585, %v645, 0.0
          %v653 = vsel %vm585, %v649, 0.0
          %v654 = vadd.f32 %v652, %v653
          %655 = vadd.xlane.f32.xlu0 %v654
          %v656 = vpop.xlane.xlu0 %655
          %v657 = vrot.slane %v656, 4
          %v658 = vadd.f32 %v656, %v657
          %v659 = vrot.slane %v658, 2
          %v660 = vadd.f32 %v658, %v659
          %v661 = vrot.slane %v660, 1
          %v662 = vadd.f32 %v660, %v661
          %s663 = vtos %v662
          %s664 = sadd.f32 %s639, %s663
          %vm665 = vcmp.eq.s32.totalorder %v233, 0
          %vm666 = vcmp.eq.s32.totalorder %v233, 1
          %v667 = vstv %s597
          %v668 = vsel %vm666, %v667, 0.0
          %v669 = vstv %s664
          %v670 = vsel %vm665, %v669, %v668
          %671 = vst [vmem:[%s206] sm:$0xff] %v670
        $region40: #{tpu_custom_call.1} parent=27 // pred_fallthru
          _
        %s672 = sand.u32 %s103, 1
        %s673 = scalar_lea.sflag [#allocation6], %s672
        %s674 = sand.u32 %s103, 1
        %s675 = smul.addr %s674, 8
        %s676 = scalar_lea.vmem [#allocation7], %s675
        // Predicated region
        $region41: #{tpu_custom_call.1} parent=27 // pred_check
          %p677 = pneg %p113
        $region42: #{tpu_custom_call.1} parent=27 // pred_check_branch
          %679 = sbr.rel (%p677) target = $region44
        $region43: #{tpu_custom_call.1} parent=27 // pred_region
          %s681 = ssub.s32 128, 128
          %682 = vsyncadd %s673, %s681
          %s683 = smul.addr %s23, 128
          %s684 = scalar_lea.hbm %s2, %s683
          %s686 = sshll.u32 %s676, 4
          %s687 = int_to_ptr.vmem [resolvable:$true] %s686
          %689 = dma.vmem_to_hbm [thread:$0]  %s687, 128, %s684, %s673
        $region44: #{tpu_custom_call.1} parent=27 // pred_fallthru
          _
      $region28: #{tpu_custom_call.1} parent=5 // pred_fallthru
        _
      %p690 = scmp.le.s32.totalorder 2, %s14
      // Predicated region
      $region45: #{tpu_custom_call.1} parent=5 // pred_check
        %p691 = pneg %p690
      $region46: #{tpu_custom_call.1} parent=5 // pred_check_branch
        %693 = sbr.rel (%p691) target = $region48
      $region47: #{tpu_custom_call.1} parent=5 // pred_region
        %s694 = ssub.s32 %s14, 2
        // Predicated region
        $region49: #{tpu_custom_call.1} parent=47 // pred_check
          %p695 = pneg %p119
        $region50: #{tpu_custom_call.1} parent=47 // pred_check_branch
          %697 = sbr.rel (%p695) target = $region52
        $region51: #{tpu_custom_call.1} parent=47 // pred_region
          %s698 = sand.u32 %s104, 1
          %s699 = scalar_lea.sflag [#allocation6], %s698
          %s700 = sand.u32 %s104, 1
          %s701 = smul.addr %s700, 8
          %s702 = scalar_lea.vmem [#allocation7], %s701
          %703 = dma.done %s699, 128
        $region52: #{tpu_custom_call.1} parent=47 // pred_fallthru
          _
      $region48: #{tpu_custom_call.1} parent=5 // pred_fallthru
        _
    $region6: #{tpu_custom_call.1} parent=1 // loop_footer
      %s18 = sadd.s32 1, %s14
    $region7: #{tpu_custom_call.1} parent=1 // loop_footer_branch
      %13 = sbr.rel target = $region3
    $region8: #{tpu_custom_call.1} parent=1 // loop_exit
      _
    %704 = vsyncpa [#allocation5], 1
    %s705 = scalar_lea.sflag [#allocation5], 1
    %706 = vsyncpa %s705, 1
    %707 = vsyncpa [#allocation6], 1
    %s708 = scalar_lea.sflag [#allocation6], 1
    %709 = vsyncpa %s708, 1

</llo_original>
